<compile_context>
chip_gen: v7x
topology: tpu7x:2x2x1
jax: 0.10.0
libtpu: 0.0.40
codegen_flags: <defaults>
</compile_context>

<pallas_src>
import functools

import jax
import jax.numpy as jnp
from jax.experimental import pallas as pl
from jax.experimental.pallas import tpu as pltpu

F_FEATURES = 11
HID = 256                 # hidden width of both layers
_LANE = 128               # lane-group padding for the augmented weight columns
AUGN = HID + _LANE        # augmented Linear output width (mean column at lane HID)
LN_EPS = 1e-5


# -----------------------------------------------------------------------------
# Kernel
# -----------------------------------------------------------------------------
def value_mlp_kernel(phi_ref,
                     w1_ref, b1_ref, g1_ref, be1_ref,
                     w2_ref, b2_ref, g2_ref, be2_ref,
                     msq_ref, head_ref, b3_ref,
                     out_ref):
    # ---- Layer 1: Linear(11 -> 256) in f32 (K=11 is MXU-trivial; keeping phi
    # f32 is free accuracy).  Column HID of w1/b1 holds the folded row mean.
    a1 = jnp.dot(phi_ref[...], w1_ref[...],
                 preferred_element_type=jnp.float32) + b1_ref[...]      # (tb, 384)
    c1 = a1[:, :HID] - a1[:, HID:HID + 1]                               # pre1 - mean(pre1)
    # E[(pre-mu)^2] as an MXU reduction (f32 for precision): col 0 of msq = 1/256.
    var1 = jnp.dot(c1 * c1, msq_ref[...],
                   preferred_element_type=jnp.float32)[:, 0:1]          # (tb, 1)
    h1 = jnp.maximum(
        c1 * jax.lax.rsqrt(var1 + LN_EPS) * g1_ref[...] + be1_ref[...], 0.0)

    # ---- Layer 2: Linear(256 -> 256) in bf16 (f32 accumulate), same folded mean.
    a2 = jnp.dot(h1.astype(jnp.bfloat16), w2_ref[...],
                 preferred_element_type=jnp.float32) + b2_ref[...]      # (tb, 384)
    c2 = a2[:, :HID] - a2[:, HID:HID + 1]
    var2 = jnp.dot(c2 * c2, msq_ref[...],
                   preferred_element_type=jnp.float32)[:, 0:1]
    h2 = jnp.maximum(
        c2 * jax.lax.rsqrt(var2 + LN_EPS) * g2_ref[...] + be2_ref[...], 0.0)

    # ---- Head: Linear(256 -> 1) on the MXU (col 0 of head_ref = w3).
    y = jnp.dot(h2.astype(jnp.bfloat16), head_ref[...],
                preferred_element_type=jnp.float32)[:, 0:1] + b3_ref[...]   # (tb, 1)

    # Lane-dense store: (tb, 1) column -> (1, tb) row so the write is a clean
    # full-width vst (the small relayout rides the XLU slot, which is now idle).
    out_ref[...] = jnp.transpose(y).astype(out_ref.dtype)


# -----------------------------------------------------------------------------
# Wrapper
# -----------------------------------------------------------------------------
def _cdiv(a, b):
    return -(-a // b)


def _round_up(a, m):
    return _cdiv(a, m) * m


def _full_spec(shape):
    # Whole-array block, same tile for every grid step (resident weights).
    return pl.BlockSpec(shape, lambda *_: (0,) * len(shape))


def _tpu_cores_per_chip():
    """TensorCores per chip: 2 on v7x-class parts, 1 on v5e/v6e/others."""
    try:
        kind = str(jax.devices()[0].device_kind).lower()
        if "v7" in kind or "tpu7" in kind:
            return 2
    except Exception:
        pass
    return 1


def _augment_linear(w, b):
    """Append the folded row-mean column: col HID = (W @ 1)/HID, sum(b)/HID."""
    din = w.shape[0]
    mean_col = jnp.sum(w, axis=1, keepdims=True) / HID                   # (din, 1)
    w_aug = jnp.concatenate(
        [w, mean_col, jnp.zeros((din, _LANE - 1), w.dtype)], axis=1)     # (din, 384)
    b_mean = jnp.sum(b, axis=1, keepdims=True) / HID                     # (1, 1)
    b_aug = jnp.concatenate(
        [b, b_mean, jnp.zeros((1, _LANE - 1), b.dtype)], axis=1)         # (1, 384)
    return w_aug, b_aug


@functools.partial(jax.jit, static_argnames=("tile_b",))
def value_mlp(phi, params, tile_b=4096):
    B, nf = phi.shape
    assert nf == F_FEATURES

    (w1, b1, g1, be1, w2, b2, g2, be2, w3, b3) = params

    # Augmented weights (folded-mean column at lane HID).  Layer 1 stays f32;
    # layer 2 / head operands go bf16 for the MXU.
    w1a, b1a = _augment_linear(w1, b1)
    w2a, b2a = _augment_linear(w2, b2)
    w2a = w2a.astype(jnp.bfloat16)

    # Constant reduction matrices: msq (f32) for E[(x-mu)^2], head (bf16) for w3.
    msq = jnp.zeros((HID, _LANE), jnp.float32).at[:, 0].set(1.0 / HID)
    headm = (jnp.zeros((HID, _LANE), jnp.float32)
             .at[:, 0].set(w3[:, 0]).astype(jnp.bfloat16))
    b3_2d = jnp.reshape(b3, (1, 1)).astype(jnp.float32)

    # ---- Batch tiling.  Big tiles amortize the ~0.35us/step grid overhead;
    # cap via vmem_limit_bytes below (48 MiB fits v7x's 64 MiB VMEM).  Only
    # split a small batch across tiles when the chip has >1 TensorCore, and
    # keep the grid a multiple of the core count so both cores get work.
    cores = _tpu_cores_per_chip()
    b8 = _round_up(B, 8)
    tb = _round_up(min(tile_b, b8), 8)
    if cores > 1 and b8 >= 8 * cores:
        g = _round_up(_cdiv(B, tb), cores)
        tb = _round_up(_cdiv(b8, g), 8)
    grid_n = _cdiv(B, tb)

    # No jnp.pad of phi: the last block may be partial (garbage rows are
    # row-local and sliced off below).
    out = pl.pallas_call(
        value_mlp_kernel,
        out_shape=jax.ShapeDtypeStruct((grid_n, 1, tb), jnp.float32),
        grid_spec=pltpu.PrefetchScalarGridSpec(
            num_scalar_prefetch=0,
            grid=(grid_n,),
            in_specs=[
                pl.BlockSpec((tb, F_FEATURES), lambda i: (i, 0)),   # phi tile
                _full_spec(w1a.shape), _full_spec(b1a.shape),
                _full_spec(g1.shape), _full_spec(be1.shape),
                _full_spec(w2a.shape), _full_spec(b2a.shape),
                _full_spec(g2.shape), _full_spec(be2.shape),
                _full_spec(msq.shape), _full_spec(headm.shape),
                _full_spec(b3_2d.shape),
            ],
            # Lane-dense output: kernel sees a (1, tb) row per grid step.
            out_specs=pl.BlockSpec((None, 1, tb), lambda i: (i, 0, 0)),
        ),
        compiler_params=pltpu.CompilerParams(
            dimension_semantics=("parallel",),
            vmem_limit_bytes=48 * 1024 * 1024),
    )(phi, w1a, b1a, g1, be1, w2a, b2a, g2, be2, msq, headm, b3_2d)

    # (grid, 1, tb) -> flat -> drop the padded tail == squeeze(-1).
    return out.reshape(-1)[:B]


# -----------------------------------------------------------------------------
# Init + pure-JAX reference (module semantics)
# -----------------------------------------------------------------------------
def _orthogonal(key, out_dim, in_dim):
    """Deterministic orthogonal init matching nn.init.orthogonal_ semantics."""
    rows, cols = max(out_dim, in_dim), min(out_dim, in_dim)
    a = jax.random.normal(key, (rows, cols), dtype=jnp.float32)
    q, r = jnp.linalg.qr(a)
    q = q * jnp.sign(jnp.diagonal(r))[None, :]
    return q if out_dim >= in_dim else q.T          # (out_dim, in_dim)


def init_params(key):
    """Params in kernel layout: W as [in, out] (f32), b/gamma/beta as [1, out]."""
    k1, k2, k3 = jax.random.split(key, 3)
    dims = [F_FEATURES, HID, HID, 1]
    keys = [k1, k2, k3]
    params = []
    for li, (din, dout) in enumerate(zip(dims[:-1], dims[1:])):
        w_torch = _orthogonal(keys[li], dout, din)           # (out, in) like nn.Linear
        params += [jnp.asarray(w_torch.T, jnp.float32),      # (in, out) for x @ W
                   jnp.zeros((1, dout), jnp.float32)]        # bias
        if li < 2:                                           # LayerNorm after hidden layers
            params += [jnp.ones((1, dout), jnp.float32),     # gamma
                       jnp.zeros((1, dout), jnp.float32)]    # beta
    return tuple(params)


def value_mlp_ref(phi, params):
    (w1, b1, g1, be1, w2, b2, g2, be2, w3, b3) = params

    def ln(h, g, b):
        mu = jnp.mean(h, axis=-1, keepdims=True)
        var = jnp.mean((h - mu) ** 2, axis=-1, keepdims=True)
        return (h - mu) * jax.lax.rsqrt(var + LN_EPS) * g + b

    h = jnp.maximum(ln(phi @ w1 + b1, g1, be1), 0.0)
    h = jnp.maximum(ln(h @ w2 + b2, g2, be2), 0.0)
    return (h @ w3 + b3)[:, 0]


if __name__ == "__main__":
    key = jax.random.PRNGKey(0)
    kp, kx = jax.random.split(key)
    params = init_params(kp)

    # Small single-tile batch and a ragged batch (partial last block / split path).
    for B in (8, 190):
        phi = jax.random.normal(jax.random.fold_in(kx, B),
                                (B, F_FEATURES), dtype=jnp.float32)
        out = jax.block_until_ready(value_mlp(phi, params))
        ref = value_mlp_ref(phi, params)
        assert out.shape == (B,)
        err = float(jnp.max(jnp.abs(out - ref)))
        # Only layer 2 / head use bf16 MXU operands; LN stats are f32.
        assert jnp.allclose(out, ref, atol=2e-2, rtol=2e-2), (B, err)

    print("KERNEL_OK")
</pallas_src>

<mosaic_0001>
module attributes {stable_mosaic.version = 11 : i64} {
  func.func @value_mlp_kernel(%arg0: i32, %arg1: memref<8x11xf32, #tpu.memory_space<vmem>>, %arg2: memref<11x384xf32, #tpu.memory_space<vmem>>, %arg3: memref<1x384xf32, #tpu.memory_space<vmem>>, %arg4: memref<1x256xf32, #tpu.memory_space<vmem>>, %arg5: memref<1x256xf32, #tpu.memory_space<vmem>>, %arg6: memref<256x384xbf16, #tpu.memory_space<vmem>>, %arg7: memref<1x384xf32, #tpu.memory_space<vmem>>, %arg8: memref<1x256xf32, #tpu.memory_space<vmem>>, %arg9: memref<1x256xf32, #tpu.memory_space<vmem>>, %arg10: memref<256x128xf32, #tpu.memory_space<vmem>>, %arg11: memref<256x128xbf16, #tpu.memory_space<vmem>>, %arg12: memref<1x1xf32, #tpu.memory_space<vmem>>, %arg13: memref<1x1x8xf32, #tpu.memory_space<vmem>>) attributes {dimension_semantics = [#tpu.dimension_semantics<parallel>], iteration_bounds = array<i64: 1>, scalar_prefetch = 0 : i64, scratch_operands = 0 : i64, tpu.core_type = #tpu.core_type<tc>, window_params = [{transform_indices = @transform_0, window_bounds = array<i64: 8, 11>}, {pipeline_mode = #tpu.pipeline_mode<synchronous>, transform_indices = @transform_1, window_bounds = array<i64: 11, 384>}, {pipeline_mode = #tpu.pipeline_mode<synchronous>, transform_indices = @transform_2, window_bounds = array<i64: 1, 384>}, {pipeline_mode = #tpu.pipeline_mode<synchronous>, transform_indices = @transform_3, window_bounds = array<i64: 1, 256>}, {pipeline_mode = #tpu.pipeline_mode<synchronous>, transform_indices = @transform_4, window_bounds = array<i64: 1, 256>}, {pipeline_mode = #tpu.pipeline_mode<synchronous>, transform_indices = @transform_5, window_bounds = array<i64: 256, 384>}, {pipeline_mode = #tpu.pipeline_mode<synchronous>, transform_indices = @transform_6, window_bounds = array<i64: 1, 384>}, {pipeline_mode = #tpu.pipeline_mode<synchronous>, transform_indices = @transform_7, window_bounds = array<i64: 1, 256>}, {pipeline_mode = #tpu.pipeline_mode<synchronous>, transform_indices = @transform_8, window_bounds = array<i64: 1, 256>}, {pipeline_mode = #tpu.pipeline_mode<synchronous>, transform_indices = @transform_9, window_bounds = array<i64: 256, 128>}, {pipeline_mode = #tpu.pipeline_mode<synchronous>, transform_indices = @transform_10, window_bounds = array<i64: 256, 128>}, {pipeline_mode = #tpu.pipeline_mode<synchronous>, transform_indices = @transform_11, window_bounds = array<i64: 1, 1>}, {transform_indices = @transform_12, window_bounds = array<i64: 1, 1, 8>}]} {
    %c0 = arith.constant 0 : index
    %c0_0 = arith.constant 0 : index
    %0 = vector.load %arg1[%c0, %c0_0] : memref<8x11xf32, #tpu.memory_space<vmem>>, vector<8x11xf32>
    %c0_1 = arith.constant 0 : index
    %c0_2 = arith.constant 0 : index
    %1 = vector.load %arg2[%c0_1, %c0_2] : memref<11x384xf32, #tpu.memory_space<vmem>>, vector<11x384xf32>
    %cst = arith.constant dense<0.000000e+00> : vector<8x384xf32>
    %2 = tpu.matmul %0, %1, %cst {dimension_numbers = #tpu.dot_dimension_numbers<[1], [0], [0], [1], [0, 0, 1, 1], [], []>} : vector<8x11xf32>, vector<11x384xf32>, vector<8x384xf32> -> vector<8x384xf32>
    %c0_3 = arith.constant 0 : index
    %c0_4 = arith.constant 0 : index
    %3 = vector.load %arg3[%c0_3, %c0_4] : memref<1x384xf32, #tpu.memory_space<vmem>>, vector<1x384xf32>
    %4 = vector.broadcast %3 : vector<1x384xf32> to vector<8x384xf32>
    %5 = arith.addf %2, %4 : vector<8x384xf32>
    %6 = vector.extract_strided_slice %5 {offsets = [0, 0], sizes = [8, 256], strides = [1, 1]} : vector<8x384xf32> to vector<8x256xf32>
    %7 = vector.extract_strided_slice %5 {offsets = [0, 256], sizes = [8, 1], strides = [1, 1]} : vector<8x384xf32> to vector<8x1xf32>
    %8 = vector.broadcast %7 : vector<8x1xf32> to vector<8x256xf32>
    %9 = arith.subf %6, %8 : vector<8x256xf32>
    %10 = arith.mulf %9, %9 : vector<8x256xf32>
    %c0_5 = arith.constant 0 : index
    %c0_6 = arith.constant 0 : index
    %11 = vector.load %arg10[%c0_5, %c0_6] : memref<256x128xf32, #tpu.memory_space<vmem>>, vector<256x128xf32>
    %cst_7 = arith.constant dense<0.000000e+00> : vector<8x128xf32>
    %12 = tpu.matmul %10, %11, %cst_7 {dimension_numbers = #tpu.dot_dimension_numbers<[1], [0], [0], [1], [0, 0, 1, 1], [], []>} : vector<8x256xf32>, vector<256x128xf32>, vector<8x128xf32> -> vector<8x128xf32>
    %13 = vector.extract_strided_slice %12 {offsets = [0, 0], sizes = [8, 1], strides = [1, 1]} : vector<8x128xf32> to vector<8x1xf32>
    %cst_8 = arith.constant 9.99999974E-6 : f32
    %14 = vector.broadcast %cst_8 : f32 to vector<8x1xf32>
    %15 = arith.addf %13, %14 : vector<8x1xf32>
    %16 = math.rsqrt %15 : vector<8x1xf32>
    %17 = vector.broadcast %16 : vector<8x1xf32> to vector<8x256xf32>
    %18 = arith.mulf %9, %17 : vector<8x256xf32>
    %c0_9 = arith.constant 0 : index
    %c0_10 = arith.constant 0 : index
    %19 = vector.load %arg4[%c0_9, %c0_10] : memref<1x256xf32, #tpu.memory_space<vmem>>, vector<1x256xf32>
    %20 = vector.broadcast %19 : vector<1x256xf32> to vector<8x256xf32>
    %21 = arith.mulf %18, %20 : vector<8x256xf32>
    %c0_11 = arith.constant 0 : index
    %c0_12 = arith.constant 0 : index
    %22 = vector.load %arg5[%c0_11, %c0_12] : memref<1x256xf32, #tpu.memory_space<vmem>>, vector<1x256xf32>
    %23 = vector.broadcast %22 : vector<1x256xf32> to vector<8x256xf32>
    %24 = arith.addf %21, %23 : vector<8x256xf32>
    %cst_13 = arith.constant 0.000000e+00 : f32
    %25 = vector.broadcast %cst_13 : f32 to vector<8x256xf32>
    %26 = arith.maximumf %24, %25 : vector<8x256xf32>
    %27 = arith.truncf %26 : vector<8x256xf32> to vector<8x256xbf16>
    %c0_14 = arith.constant 0 : index
    %c0_15 = arith.constant 0 : index
    %28 = vector.load %arg6[%c0_14, %c0_15] : memref<256x384xbf16, #tpu.memory_space<vmem>>, vector<256x384xbf16>
    %cst_16 = arith.constant dense<0.000000e+00> : vector<8x384xf32>
    %29 = tpu.matmul %27, %28, %cst_16 {dimension_numbers = #tpu.dot_dimension_numbers<[1], [0], [0], [1], [0, 0, 1, 1], [], []>} : vector<8x256xbf16>, vector<256x384xbf16>, vector<8x384xf32> -> vector<8x384xf32>
    %c0_17 = arith.constant 0 : index
    %c0_18 = arith.constant 0 : index
    %30 = vector.load %arg7[%c0_17, %c0_18] : memref<1x384xf32, #tpu.memory_space<vmem>>, vector<1x384xf32>
    %31 = vector.broadcast %30 : vector<1x384xf32> to vector<8x384xf32>
    %32 = arith.addf %29, %31 : vector<8x384xf32>
    %33 = vector.extract_strided_slice %32 {offsets = [0, 0], sizes = [8, 256], strides = [1, 1]} : vector<8x384xf32> to vector<8x256xf32>
    %34 = vector.extract_strided_slice %32 {offsets = [0, 256], sizes = [8, 1], strides = [1, 1]} : vector<8x384xf32> to vector<8x1xf32>
    %35 = vector.broadcast %34 : vector<8x1xf32> to vector<8x256xf32>
    %36 = arith.subf %33, %35 : vector<8x256xf32>
    %37 = arith.mulf %36, %36 : vector<8x256xf32>
    %c0_19 = arith.constant 0 : index
    %c0_20 = arith.constant 0 : index
    %38 = vector.load %arg10[%c0_19, %c0_20] : memref<256x128xf32, #tpu.memory_space<vmem>>, vector<256x128xf32>
    %cst_21 = arith.constant dense<0.000000e+00> : vector<8x128xf32>
    %39 = tpu.matmul %37, %38, %cst_21 {dimension_numbers = #tpu.dot_dimension_numbers<[1], [0], [0], [1], [0, 0, 1, 1], [], []>} : vector<8x256xf32>, vector<256x128xf32>, vector<8x128xf32> -> vector<8x128xf32>
    %40 = vector.extract_strided_slice %39 {offsets = [0, 0], sizes = [8, 1], strides = [1, 1]} : vector<8x128xf32> to vector<8x1xf32>
    %cst_22 = arith.constant 9.99999974E-6 : f32
    %41 = vector.broadcast %cst_22 : f32 to vector<8x1xf32>
    %42 = arith.addf %40, %41 : vector<8x1xf32>
    %43 = math.rsqrt %42 : vector<8x1xf32>
    %44 = vector.broadcast %43 : vector<8x1xf32> to vector<8x256xf32>
    %45 = arith.mulf %36, %44 : vector<8x256xf32>
    %c0_23 = arith.constant 0 : index
    %c0_24 = arith.constant 0 : index
    %46 = vector.load %arg8[%c0_23, %c0_24] : memref<1x256xf32, #tpu.memory_space<vmem>>, vector<1x256xf32>
    %47 = vector.broadcast %46 : vector<1x256xf32> to vector<8x256xf32>
    %48 = arith.mulf %45, %47 : vector<8x256xf32>
    %c0_25 = arith.constant 0 : index
    %c0_26 = arith.constant 0 : index
    %49 = vector.load %arg9[%c0_25, %c0_26] : memref<1x256xf32, #tpu.memory_space<vmem>>, vector<1x256xf32>
    %50 = vector.broadcast %49 : vector<1x256xf32> to vector<8x256xf32>
    %51 = arith.addf %48, %50 : vector<8x256xf32>
    %cst_27 = arith.constant 0.000000e+00 : f32
    %52 = vector.broadcast %cst_27 : f32 to vector<8x256xf32>
    %53 = arith.maximumf %51, %52 : vector<8x256xf32>
    %54 = arith.truncf %53 : vector<8x256xf32> to vector<8x256xbf16>
    %c0_28 = arith.constant 0 : index
    %c0_29 = arith.constant 0 : index
    %55 = vector.load %arg11[%c0_28, %c0_29] : memref<256x128xbf16, #tpu.memory_space<vmem>>, vector<256x128xbf16>
    %cst_30 = arith.constant dense<0.000000e+00> : vector<8x128xf32>
    %56 = tpu.matmul %54, %55, %cst_30 {dimension_numbers = #tpu.dot_dimension_numbers<[1], [0], [0], [1], [0, 0, 1, 1], [], []>} : vector<8x256xbf16>, vector<256x128xbf16>, vector<8x128xf32> -> vector<8x128xf32>
    %57 = vector.extract_strided_slice %56 {offsets = [0, 0], sizes = [8, 1], strides = [1, 1]} : vector<8x128xf32> to vector<8x1xf32>
    %c0_31 = arith.constant 0 : index
    %c0_32 = arith.constant 0 : index
    %58 = vector.load %arg12[%c0_31, %c0_32] : memref<1x1xf32, #tpu.memory_space<vmem>>, vector<1x1xf32>
    %59 = vector.broadcast %58 : vector<1x1xf32> to vector<8x1xf32>
    %60 = arith.addf %57, %59 : vector<8x1xf32>
    %61 = tpu.transpose %60, [1, 0] : vector<8x1xf32> -> vector<1x8xf32>
    %c0_33 = arith.constant 0 : index
    %c0_34 = arith.constant 0 : index
    %c0_35 = arith.constant 0 : index
    %62 = vector.load %arg13[%c0_33, %c0_34, %c0_35] : memref<1x1x8xf32, #tpu.memory_space<vmem>>, vector<1x1x8xf32>
    %63 = vector.shape_cast %62 : vector<1x1x8xf32> to vector<1x8xf32>
    %64 = vector.shape_cast %61 : vector<1x8xf32> to vector<1x1x8xf32>
    tpu.vector_store %arg13[%c0_33, %c0_34, %c0_35], %64 {strides = array<i32>} : memref<1x1x8xf32, #tpu.memory_space<vmem>>, vector<1x1x8xf32>,
    return
  }
  func.func @transform_0(%arg0: i32) -> (i32, i32) {
    %c0_i32 = arith.constant 0 : i32
    %c0_i32_0 = arith.constant 0 : i32
    return %arg0, %c0_i32 : i32, i32
  }
  func.func @transform_1(%arg0: i32) -> (i32, i32) {
    %c0_i32 = arith.constant 0 : i32
    %c0_i32_0 = arith.constant 0 : i32
    %c0_i32_1 = arith.constant 0 : i32
    return %c0_i32, %c0_i32_0 : i32, i32
  }
  func.func @transform_2(%arg0: i32) -> (i32, i32) {
    %c0_i32 = arith.constant 0 : i32
    %c0_i32_0 = arith.constant 0 : i32
    %c0_i32_1 = arith.constant 0 : i32
    return %c0_i32, %c0_i32_0 : i32, i32
  }
  func.func @transform_3(%arg0: i32) -> (i32, i32) {
    %c0_i32 = arith.constant 0 : i32
    %c0_i32_0 = arith.constant 0 : i32
    %c0_i32_1 = arith.constant 0 : i32
    return %c0_i32, %c0_i32_0 : i32, i32
  }
  func.func @transform_4(%arg0: i32) -> (i32, i32) {
    %c0_i32 = arith.constant 0 : i32
    %c0_i32_0 = arith.constant 0 : i32
    %c0_i32_1 = arith.constant 0 : i32
    return %c0_i32, %c0_i32_0 : i32, i32
  }
  func.func @transform_5(%arg0: i32) -> (i32, i32) {
    %c0_i32 = arith.constant 0 : i32
    %c0_i32_0 = arith.constant 0 : i32
    %c0_i32_1 = arith.constant 0 : i32
    return %c0_i32, %c0_i32_0 : i32, i32
  }
  func.func @transform_6(%arg0: i32) -> (i32, i32) {
    %c0_i32 = arith.constant 0 : i32
    %c0_i32_0 = arith.constant 0 : i32
    %c0_i32_1 = arith.constant 0 : i32
    return %c0_i32, %c0_i32_0 : i32, i32
  }
  func.func @transform_7(%arg0: i32) -> (i32, i32) {
    %c0_i32 = arith.constant 0 : i32
    %c0_i32_0 = arith.constant 0 : i32
    %c0_i32_1 = arith.constant 0 : i32
    return %c0_i32, %c0_i32_0 : i32, i32
  }
  func.func @transform_8(%arg0: i32) -> (i32, i32) {
    %c0_i32 = arith.constant 0 : i32
    %c0_i32_0 = arith.constant 0 : i32
    %c0_i32_1 = arith.constant 0 : i32
    return %c0_i32, %c0_i32_0 : i32, i32
  }
  func.func @transform_9(%arg0: i32) -> (i32, i32) {
    %c0_i32 = arith.constant 0 : i32
    %c0_i32_0 = arith.constant 0 : i32
    %c0_i32_1 = arith.constant 0 : i32
    return %c0_i32, %c0_i32_0 : i32, i32
  }
  func.func @transform_10(%arg0: i32) -> (i32, i32) {
    %c0_i32 = arith.constant 0 : i32
    %c0_i32_0 = arith.constant 0 : i32
    %c0_i32_1 = arith.constant 0 : i32
    return %c0_i32, %c0_i32_0 : i32, i32
  }
  func.func @transform_11(%arg0: i32) -> (i32, i32) {
    %c0_i32 = arith.constant 0 : i32
    %c0_i32_0 = arith.constant 0 : i32
    %c0_i32_1 = arith.constant 0 : i32
    return %c0_i32, %c0_i32_0 : i32, i32
  }
  func.func @transform_12(%arg0: i32) -> (i32, i32, i32) {
    %c0_i32 = arith.constant 0 : i32
    %c0_i32_0 = arith.constant 0 : i32
    %c0_i32_1 = arith.constant 0 : i32
    return %arg0, %c0_i32, %c0_i32_0 : i32, i32, i32
  }
}

</mosaic_0001>

<llo_original>
// kernel: value_mlp.1
$region0: #{value_mlp.1}
  #allocation0 [shape = 'u32[]', space=smem, size = 0x4, offset = 0x4, fixed_abs, tag = 'smem constant byte address 0x4 - core index']
  #allocation1 [shape = 'u32[144,128]{1,0:T(1,128)}', space=vmem, size = 0x12000, scoped, tag = 'internal scratch']
  #allocation2 [shape = 'f32[1,1]{1,0:T(1,128)S(1)}', space=vmem, size = 0x200, scoped, tag = 'scoped memory for value_mlp.1']
  %s0 = inlined_call_operand.vmem [shape: f32[8,11], index: 0, kind: input, shape index: {}]
  %s1 = inlined_call_operand.vmem [shape: f32[11,384], index: 1, kind: input, shape index: {}]
  %s2 = inlined_call_operand.vmem [shape: f32[1,384], index: 2, kind: input, shape index: {}]
  %s3 = inlined_call_operand.vmem [shape: f32[1,256], index: 3, kind: input, shape index: {}]
  %s4 = inlined_call_operand.vmem [shape: f32[1,256], index: 4, kind: input, shape index: {}]
  %s5 = inlined_call_operand.vmem [shape: bf16[256,384], index: 5, kind: input, shape index: {}]
  %s6 = inlined_call_operand.vmem [shape: f32[1,384], index: 6, kind: input, shape index: {}]
  %s7 = inlined_call_operand.vmem [shape: f32[1,256], index: 7, kind: input, shape index: {}]
  %s8 = inlined_call_operand.vmem [shape: f32[1,256], index: 8, kind: input, shape index: {}]
  %s9 = inlined_call_operand.vmem [shape: f32[256,128], index: 9, kind: input, shape index: {}]
  %s10 = inlined_call_operand.vmem [shape: bf16[256,128], index: 10, kind: input, shape index: {}]
  %s11 = inlined_call_operand.<no memory space> [shape: f32[1,1], index: 11, kind: input, shape index: {}]
  %s12 = inlined_call_operand.hbm [shape: f32[1,1,8], index: 12, kind: output, shape index: {}]
  %s13 = sld [smem:[#allocation0]]
  $region58: #{value_mlp.1} parent=0
    _
  %s15 = ssub.s32 1, %s13
  %s16 = scalar_select 0, %s15, %s13
  %v17 = vstv %s11
  %18 = vst [vmem:[#allocation2] sm:$0x1] %v17
  $region1: #{value_mlp.1} parent=0
    #allocation3 [shape = 'u8[512]{0}', space=vmem, size = 0x400, scoped, tag = 'output window, operand 0, single buffered']
    #allocation4 [shape = 's32[1]{0}', space=sflag, size = 0x4, scoped, tag = 'scoped memory for value_mlp.1']
    %19 = vsyncpa [#allocation4], 0
    // Predicated region
    $region2: #{value_mlp.1} parent=1 // pred_check
      _
    $region3: #{value_mlp.1} parent=1 // pred_check_branch
      %21 = sbr.rel (0) target = $region5
    $region4: #{value_mlp.1} parent=1 // pred_region
      _
    $region5: #{value_mlp.1} parent=1 // pred_fallthru
      _
    // Predicated region
    $region6: #{value_mlp.1} parent=1 // pred_check
      _
    $region7: #{value_mlp.1} parent=1 // pred_check_branch
      %23 = sbr.rel (0) target = $region9
    $region8: #{value_mlp.1} parent=1 // pred_region
      _
    $region9: #{value_mlp.1} parent=1 // pred_fallthru
      _
    // Predicated region
    $region10: #{value_mlp.1} parent=1 // pred_check
      _
    $region11: #{value_mlp.1} parent=1 // pred_check_branch
      %25 = sbr.rel (0) target = $region13
    $region12: #{value_mlp.1} parent=1 // pred_region
      _
    $region13: #{value_mlp.1} parent=1 // pred_fallthru
      _
    // Predicated region
    $region14: #{value_mlp.1} parent=1 // pred_check
      _
    $region15: #{value_mlp.1} parent=1 // pred_check_branch
      %27 = sbr.rel (0) target = $region17
    $region16: #{value_mlp.1} parent=1 // pred_region
      _
    $region17: #{value_mlp.1} parent=1 // pred_fallthru
      _
    // Predicated region
    $region18: #{value_mlp.1} parent=1 // pred_check
      _
    $region19: #{value_mlp.1} parent=1 // pred_check_branch
      %29 = sbr.rel (0) target = $region21
    $region20: #{value_mlp.1} parent=1 // pred_region
      _
    $region21: #{value_mlp.1} parent=1 // pred_fallthru
      _
    // Predicated region
    $region22: #{value_mlp.1} parent=1 // pred_check
      _
    $region23: #{value_mlp.1} parent=1 // pred_check_branch
      %31 = sbr.rel (0) target = $region25
    $region24: #{value_mlp.1} parent=1 // pred_region
      _
    $region25: #{value_mlp.1} parent=1 // pred_fallthru
      _
    // Predicated region
    $region26: #{value_mlp.1} parent=1 // pred_check
      _
    $region27: #{value_mlp.1} parent=1 // pred_check_branch
      %33 = sbr.rel (0) target = $region29
    $region28: #{value_mlp.1} parent=1 // pred_region
      _
    $region29: #{value_mlp.1} parent=1 // pred_fallthru
      _
    // Predicated region
    $region30: #{value_mlp.1} parent=1 // pred_check
      _
    $region31: #{value_mlp.1} parent=1 // pred_check_branch
      %35 = sbr.rel (0) target = $region33
    $region32: #{value_mlp.1} parent=1 // pred_region
      _
    $region33: #{value_mlp.1} parent=1 // pred_fallthru
      _
    // Predicated region
    $region34: #{value_mlp.1} parent=1 // pred_check
      _
    $region35: #{value_mlp.1} parent=1 // pred_check_branch
      %37 = sbr.rel (0) target = $region37
    $region36: #{value_mlp.1} parent=1 // pred_region
      _
    $region37: #{value_mlp.1} parent=1 // pred_fallthru
      _
    // Predicated region
    $region38: #{value_mlp.1} parent=1 // pred_check
      _
    $region39: #{value_mlp.1} parent=1 // pred_check_branch
      %39 = sbr.rel (0) target = $region41
    $region40: #{value_mlp.1} parent=1 // pred_region
      _
    $region41: #{value_mlp.1} parent=1 // pred_fallthru
      _
    // Predicated region
    $region42: #{value_mlp.1} parent=1 // pred_check
      _
    $region43: #{value_mlp.1} parent=1 // pred_check_branch
      %41 = sbr.rel (0) target = $region45
    $region44: #{value_mlp.1} parent=1 // pred_region
      _
    $region45: #{value_mlp.1} parent=1 // pred_fallthru
      _
    // Predicated region
    $region46: #{value_mlp.1} parent=1 // pred_check
      _
    $region47: #{value_mlp.1} parent=1 // pred_check_branch
      %43 = sbr.rel (0) target = $region49
    $region48: #{value_mlp.1} parent=1 // pred_region
      _
    $region49: #{value_mlp.1} parent=1 // pred_fallthru
      _
    %v45 = vld [vmem:[%s0] sm:$0xff]
    %v46 = vld [vmem:[%s1] sm:$0xff]
    %v47 = vld [vmem:[%s1 + $0x8] sm:$0xff]
    %v48 = vld [vmem:[%s1 + $0x10] sm:$0xff]
    %v49 = vld [vmem:[%s1 + $0x18] sm:$0x7]
    %v50 = vld [vmem:[%s1 + $0x20] sm:$0x7]
    %v51 = vld [vmem:[%s1 + $0x28] sm:$0x7]
    %v52 = vld [vmem:[%s2] sm:$0x7]
    %v54 = vlaneseq
    %v55 = vshrl.u32 %v54, 7
    %v56 = vsub.s32 0, %v55
    %v57 = vrot.slane %v52, %v56
    %v58 = vlaneseq
    %v59 = vshrl.u32 %v58, 7
    %v60 = vsub.s32 1, %v59
    %v61 = vrot.slane %v52, %v60
    %v62 = vlaneseq
    %v63 = vshrl.u32 %v62, 7
    %v64 = vsub.s32 2, %v63
    %v65 = vrot.slane %v52, %v64
    %vm69 = vcmask 89088
    %v71 = vsel %vm69, %v45, 0
    %vm73 = vcmask 1042432
    %v75 = vsel %vm73, %v49, 0
    %v78 = vsel %vm73, %v50, 0
    %v81 = vsel %vm73, %v51, 0
    %83 = vmatprep.subr.mxu0 %v47
    %84 = vmatpush1.msra.mxu0 %v46
    %85 = vmatprep.subr.mxu0 %v78
    %86 = vmatpush1.msra.mxu0 %v75
    %87 = vmatprep.subr.mxu0 0.0
    %88 = vmatpush1.msra.mxu0 0.0
    %89 = vmatprep.subr.mxu0 0.0
    %90 = vmatpush1.msra.mxu0 0.0
    %91 = vmatprep.subr.mxu0 0.0
    %92 = vmatpush1.msra.mxu0 0.0
    %93 = vmatprep.subr.mxu0 0.0
    %94 = vmatpush1.msra.mxu0 0.0
    %95 = vmatprep.subr.mxu0 0.0
    %96 = vmatpush1.msra.mxu0 0.0
    %97 = vmatprep.subr.mxu0 0.0
    %98 = vmatpush1.msra.mxu0 0.0
    %99 = vmatprep.subr.mxu0 0.0
    %100 = vmatpush1.msra.mxu0 0.0
    %101 = vmatprep.subr.mxu0 0.0
    %102 = vmatpush1.msra.mxu0 0.0
    %103 = vmatprep.subr.mxu0 0.0
    %104 = vmatpush1.msra.mxu0 0.0
    %105 = vmatprep.subr.mxu0 0.0
    %106 = vmatpush1.msra.mxu0 0.0
    %107 = vmatprep.subr.mxu0 0.0
    %108 = vmatpush1.msra.mxu0 0.0
    %109 = vmatprep.subr.mxu0 0.0
    %110 = vmatpush1.msra.mxu0 0.0
    %111 = vmatprep.subr.mxu0 0.0
    %112 = vmatpush1.msra.mxu0 0.0
    %113 = vmatprep.subr.mxu0 0.0
    %114 = vmatpush1.msra.mxu0 0.0
    %115 = vmatprep.subr.mxu0 0.0
    %116 = vmatpush1.msra.mxu0 0.0
    %117 = vmatprep.subr.mxu0 0.0
    %118 = vmatpush1.msra.mxu0 0.0
    %119 = vmatprep.subr.mxu0 0.0
    %120 = vmatpush1.msra.mxu0 0.0
    %121 = vmatprep.subr.mxu0 0.0
    %122 = vmatpush1.msra.mxu0 0.0
    %123 = vmatprep.subr.mxu0 0.0
    %124 = vmatpush1.msra.mxu0 0.0
    %125 = vmatprep.subr.mxu0 0.0
    %126 = vmatpush1.msra.mxu0 0.0
    %127 = vmatprep.subr.mxu0 0.0
    %128 = vmatpush1.msra.mxu0 0.0
    %129 = vmatprep.subr.mxu0 0.0
    %130 = vmatpush1.msra.mxu0 0.0
    %131 = vmatprep.subr.mxu0 0.0
    %132 = vmatpush1.msra.mxu0 0.0
    %133 = vmatprep.subr.mxu0 0.0
    %134 = vmatpush1.msra.mxu0 0.0
    %135 = vmatprep.subr.mxu0 0.0
    %136 = vmatpush1.msra.mxu0 0.0
    %137 = vmatprep.subr.mxu0 0.0
    %138 = vmatpush1.msra.mxu0 0.0
    %139 = vmatprep.subr.mxu0 0.0
    %140 = vmatpush1.msra.mxu0 0.0
    %141 = vmatprep.subr.mxu0 0.0
    %142 = vmatpush1.msra.mxu0 0.0
    %143 = vmatprep.subr.mxu0 0.0
    %144 = vmatpush1.msra.mxu0 0.0
    %145 = vmatprep.subr.mxu0 0.0
    %146 = vmatpush1.msra.mxu0 0.0
    %147 = vmatprep.mubr.f32.mxu0 0.0
    %148 = vmatmul.mubr.f32.gmra.mrb[0].mxu0 %v71
    %v149 = vpop.f32.mrb[0].mxu0
    %v150 = vadd.f32 %v57, %v149
    %v151 = vpop.f32.mrb[0].mxu0
    %v152 = vadd.f32 %v61, %v151
    %153 = vdwg.mxu0
    %154 = vmatprep.subr.mxu0 0.0
    %155 = vmatpush1.msra.mxu0 %v48
    %156 = vmatprep.subr.mxu0 0.0
    %157 = vmatpush1.msra.mxu0 %v81
    %158 = vmatprep.subr.mxu0 0.0
    %159 = vmatpush1.msra.mxu0 0.0
    %160 = vmatprep.subr.mxu0 0.0
    %161 = vmatpush1.msra.mxu0 0.0
    %162 = vmatprep.subr.mxu0 0.0
    %163 = vmatpush1.msra.mxu0 0.0
    %164 = vmatprep.subr.mxu0 0.0
    %165 = vmatpush1.msra.mxu0 0.0
    %166 = vmatprep.subr.mxu0 0.0
    %167 = vmatpush1.msra.mxu0 0.0
    %168 = vmatprep.subr.mxu0 0.0
    %169 = vmatpush1.msra.mxu0 0.0
    %170 = vmatprep.subr.mxu0 0.0
    %171 = vmatpush1.msra.mxu0 0.0
    %172 = vmatprep.subr.mxu0 0.0
    %173 = vmatpush1.msra.mxu0 0.0
    %174 = vmatprep.subr.mxu0 0.0
    %175 = vmatpush1.msra.mxu0 0.0
    %176 = vmatprep.subr.mxu0 0.0
    %177 = vmatpush1.msra.mxu0 0.0
    %178 = vmatprep.subr.mxu0 0.0
    %179 = vmatpush1.msra.mxu0 0.0
    %180 = vmatprep.subr.mxu0 0.0
    %181 = vmatpush1.msra.mxu0 0.0
    %182 = vmatprep.subr.mxu0 0.0
    %183 = vmatpush1.msra.mxu0 0.0
    %184 = vmatprep.subr.mxu0 0.0
    %185 = vmatpush1.msra.mxu0 0.0
    %186 = vmatprep.subr.mxu0 0.0
    %187 = vmatpush1.msra.mxu0 0.0
    %188 = vmatprep.subr.mxu0 0.0
    %189 = vmatpush1.msra.mxu0 0.0
    %190 = vmatprep.subr.mxu0 0.0
    %191 = vmatpush1.msra.mxu0 0.0
    %192 = vmatprep.subr.mxu0 0.0
    %193 = vmatpush1.msra.mxu0 0.0
    %194 = vmatprep.subr.mxu0 0.0
    %195 = vmatpush1.msra.mxu0 0.0
    %196 = vmatprep.subr.mxu0 0.0
    %197 = vmatpush1.msra.mxu0 0.0
    %198 = vmatprep.subr.mxu0 0.0
    %199 = vmatpush1.msra.mxu0 0.0
    %200 = vmatprep.subr.mxu0 0.0
    %201 = vmatpush1.msra.mxu0 0.0
    %202 = vmatprep.subr.mxu0 0.0
    %203 = vmatpush1.msra.mxu0 0.0
    %204 = vmatprep.subr.mxu0 0.0
    %205 = vmatpush1.msra.mxu0 0.0
    %206 = vmatprep.subr.mxu0 0.0
    %207 = vmatpush1.msra.mxu0 0.0
    %208 = vmatprep.subr.mxu0 0.0
    %209 = vmatpush1.msra.mxu0 0.0
    %210 = vmatprep.subr.mxu0 0.0
    %211 = vmatpush1.msra.mxu0 0.0
    %212 = vmatprep.subr.mxu0 0.0
    %213 = vmatpush1.msra.mxu0 0.0
    %214 = vmatprep.subr.mxu0 0.0
    %215 = vmatpush1.msra.mxu0 0.0
    %216 = vmatprep.subr.mxu0 0.0
    %217 = vmatpush1.msra.mxu0 0.0
    %218 = vmatprep.mubr.f32.mxu0 0.0
    %219 = vmatmul.mubr.f32.gmra.mrb[0].mxu0 %v71
    %v220 = vpop.f32.mrb[0].mxu0
    %v221 = vadd.f32 %v65, %v220
    %v222 = vpop.f32.mrb[0].mxu0
    %223 = vdwg.mxu0
    %225 = vset.pattern.permute.xlu0 0
    %226 = vperm.xlu0 %225, %v221
    %v227 = vpop.permute.xlu0 %226
    %v229 = vsub.f32 %v150, %v227
    %v230 = vsub.f32 %v152, %v227
    %v231 = vmul.f32 %v229, %v229
    %v232 = vmul.f32 %v230, %v230
    %v233 = vld [vmem:[%s9] sm:$0xff]
    %v234 = vld [vmem:[%s9 + $0x8] sm:$0xff]
    %v235 = vld [vmem:[%s9 + $0x10] sm:$0xff]
    %v236 = vld [vmem:[%s9 + $0x18] sm:$0xff]
    %v237 = vld [vmem:[%s9 + $0x20] sm:$0xff]
    %v238 = vld [vmem:[%s9 + $0x28] sm:$0xff]
    %v239 = vld [vmem:[%s9 + $0x30] sm:$0xff]
    %v240 = vld [vmem:[%s9 + $0x38] sm:$0xff]
    %v241 = vld [vmem:[%s9 + $0x40] sm:$0xff]
    %v242 = vld [vmem:[%s9 + $0x48] sm:$0xff]
    %v243 = vld [vmem:[%s9 + $0x50] sm:$0xff]
    %v244 = vld [vmem:[%s9 + $0x58] sm:$0xff]
    %v245 = vld [vmem:[%s9 + $0x60] sm:$0xff]
    %v246 = vld [vmem:[%s9 + $0x68] sm:$0xff]
    %v247 = vld [vmem:[%s9 + $0x70] sm:$0xff]
    %v248 = vld [vmem:[%s9 + $0x78] sm:$0xff]
    %v249 = vld [vmem:[%s9 + $0x80] sm:$0xff]
    %v250 = vld [vmem:[%s9 + $0x88] sm:$0xff]
    %v251 = vld [vmem:[%s9 + $0x90] sm:$0xff]
    %v252 = vld [vmem:[%s9 + $0x98] sm:$0xff]
    %v253 = vld [vmem:[%s9 + $0xa0] sm:$0xff]
    %v254 = vld [vmem:[%s9 + $0xa8] sm:$0xff]
    %v255 = vld [vmem:[%s9 + $0xb0] sm:$0xff]
    %v256 = vld [vmem:[%s9 + $0xb8] sm:$0xff]
    %v257 = vld [vmem:[%s9 + $0xc0] sm:$0xff]
    %v258 = vld [vmem:[%s9 + $0xc8] sm:$0xff]
    %v259 = vld [vmem:[%s9 + $0xd0] sm:$0xff]
    %v260 = vld [vmem:[%s9 + $0xd8] sm:$0xff]
    %v261 = vld [vmem:[%s9 + $0xe0] sm:$0xff]
    %v262 = vld [vmem:[%s9 + $0xe8] sm:$0xff]
    %v263 = vld [vmem:[%s9 + $0xf0] sm:$0xff]
    %v264 = vld [vmem:[%s9 + $0xf8] sm:$0xff]
    %265 = vmatprep.subr.mxu0 0.0
    %266 = vmatpush1.msra.mxu0 %v233
    %267 = vmatprep.subr.mxu0 0.0
    %268 = vmatpush1.msra.mxu0 %v234
    %269 = vmatprep.subr.mxu0 0.0
    %270 = vmatpush1.msra.mxu0 %v235
    %271 = vmatprep.subr.mxu0 0.0
    %272 = vmatpush1.msra.mxu0 %v236
    %273 = vmatprep.subr.mxu0 0.0
    %274 = vmatpush1.msra.mxu0 %v237
    %275 = vmatprep.subr.mxu0 0.0
    %276 = vmatpush1.msra.mxu0 %v238
    %277 = vmatprep.subr.mxu0 0.0
    %278 = vmatpush1.msra.mxu0 %v239
    %279 = vmatprep.subr.mxu0 0.0
    %280 = vmatpush1.msra.mxu0 %v240
    %281 = vmatprep.subr.mxu0 0.0
    %282 = vmatpush1.msra.mxu0 %v241
    %283 = vmatprep.subr.mxu0 0.0
    %284 = vmatpush1.msra.mxu0 %v242
    %285 = vmatprep.subr.mxu0 0.0
    %286 = vmatpush1.msra.mxu0 %v243
    %287 = vmatprep.subr.mxu0 0.0
    %288 = vmatpush1.msra.mxu0 %v244
    %289 = vmatprep.subr.mxu0 0.0
    %290 = vmatpush1.msra.mxu0 %v245
    %291 = vmatprep.subr.mxu0 0.0
    %292 = vmatpush1.msra.mxu0 %v246
    %293 = vmatprep.subr.mxu0 0.0
    %294 = vmatpush1.msra.mxu0 %v247
    %295 = vmatprep.subr.mxu0 0.0
    %296 = vmatpush1.msra.mxu0 %v248
    %297 = vmatprep.subr.mxu0 0.0
    %298 = vmatpush1.msra.mxu0 %v249
    %299 = vmatprep.subr.mxu0 0.0
    %300 = vmatpush1.msra.mxu0 %v250
    %301 = vmatprep.subr.mxu0 0.0
    %302 = vmatpush1.msra.mxu0 %v251
    %303 = vmatprep.subr.mxu0 0.0
    %304 = vmatpush1.msra.mxu0 %v252
    %305 = vmatprep.subr.mxu0 0.0
    %306 = vmatpush1.msra.mxu0 %v253
    %307 = vmatprep.subr.mxu0 0.0
    %308 = vmatpush1.msra.mxu0 %v254
    %309 = vmatprep.subr.mxu0 0.0
    %310 = vmatpush1.msra.mxu0 %v255
    %311 = vmatprep.subr.mxu0 0.0
    %312 = vmatpush1.msra.mxu0 %v256
    %313 = vmatprep.subr.mxu0 0.0
    %314 = vmatpush1.msra.mxu0 %v257
    %315 = vmatprep.subr.mxu0 0.0
    %316 = vmatpush1.msra.mxu0 %v258
    %317 = vmatprep.subr.mxu0 0.0
    %318 = vmatpush1.msra.mxu0 %v259
    %319 = vmatprep.subr.mxu0 0.0
    %320 = vmatpush1.msra.mxu0 %v260
    %321 = vmatprep.subr.mxu0 0.0
    %322 = vmatpush1.msra.mxu0 %v261
    %323 = vmatprep.subr.mxu0 0.0
    %324 = vmatpush1.msra.mxu0 %v262
    %325 = vmatprep.subr.mxu0 0.0
    %326 = vmatpush1.msra.mxu0 %v263
    %327 = vmatprep.subr.mxu0 0.0
    %328 = vmatpush1.msra.mxu0 %v264
    %329 = vmatprep.mubr.f32.mxu0 %v232
    %330 = vmatmul.mubr.f32.gmra.mrb[0].mxu0 %v231
    %v331 = vpop.f32.mrb[0].mxu0
    %v332 = vadd.f32 0.0, %v331
    %v333 = vpop.f32.mrb[0].mxu0
    %334 = vdwg.mxu0
    %v335 = vadd.f32 %v332, 1e-05
    %v336 = vrsqrt.pop %v335
    %338 = vset.pattern.permute.xlu0 0
    %339 = vperm.xlu0 %338, %v336
    %v340 = vpop.permute.xlu0 %339
    %v342 = vmul.f32 %v229, %v340
    %v343 = vmul.f32 %v230, %v340
    %v344 = vld [vmem:[%s3] sm:$0x3]
    %v346 = vlaneseq
    %v347 = vshrl.u32 %v346, 7
    %v348 = vsub.s32 0, %v347
    %v349 = vrot.slane %v344, %v348
    %v350 = vlaneseq
    %v351 = vshrl.u32 %v350, 7
    %v352 = vsub.s32 1, %v351
    %v353 = vrot.slane %v344, %v352
    %v356 = vmul.f32 %v342, %v349
    %v357 = vmul.f32 %v343, %v353
    %v358 = vld [vmem:[%s4] sm:$0x3]
    %v360 = vlaneseq
    %v361 = vshrl.u32 %v360, 7
    %v362 = vsub.s32 0, %v361
    %v363 = vrot.slane %v358, %v362
    %v364 = vlaneseq
    %v365 = vshrl.u32 %v364, 7
    %v366 = vsub.s32 1, %v365
    %v367 = vrot.slane %v358, %v366
    %v370 = vadd.f32 %v356, %v363
    %v371 = vadd.f32 %v357, %v367
    %v372 = vmax.f32 %v370, 0.0
    %v373 = vmax.f32 %v371, 0.0
    %v374 = vpack.c.bf16 %v372, %v372
    %v375 = vpack.c.bf16 %v373, %v373
    %v376 = vld [vmem:[%s5] sm:$0xff]
    %v377 = vld [vmem:[%s5 + $0x8] sm:$0xf]
    %v378 = vld [vmem:[%s5 + $0xc] sm:$0xff]
    %v379 = vld [vmem:[%s5 + $0x14] sm:$0xf]
    %v380 = vld [vmem:[%s5 + $0x18] sm:$0xff]
    %v381 = vld [vmem:[%s5 + $0x20] sm:$0xf]
    %v382 = vld [vmem:[%s5 + $0x24] sm:$0xff]
    %v383 = vld [vmem:[%s5 + $0x2c] sm:$0xf]
    %v384 = vld [vmem:[%s5 + $0x30] sm:$0xff]
    %v385 = vld [vmem:[%s5 + $0x38] sm:$0xf]
    %v386 = vld [vmem:[%s5 + $0x3c] sm:$0xff]
    %v387 = vld [vmem:[%s5 + $0x44] sm:$0xf]
    %v388 = vld [vmem:[%s5 + $0x48] sm:$0xff]
    %v389 = vld [vmem:[%s5 + $0x50] sm:$0xf]
    %v390 = vld [vmem:[%s5 + $0x54] sm:$0xff]
    %v391 = vld [vmem:[%s5 + $0x5c] sm:$0xf]
    %v392 = vld [vmem:[%s5 + $0x60] sm:$0xff]
    %v393 = vld [vmem:[%s5 + $0x68] sm:$0xf]
    %v394 = vld [vmem:[%s5 + $0x6c] sm:$0xff]
    %v395 = vld [vmem:[%s5 + $0x74] sm:$0xf]
    %v396 = vld [vmem:[%s5 + $0x78] sm:$0xff]
    %v397 = vld [vmem:[%s5 + $0x80] sm:$0xf]
    %v398 = vld [vmem:[%s5 + $0x84] sm:$0xff]
    %v399 = vld [vmem:[%s5 + $0x8c] sm:$0xf]
    %v400 = vld [vmem:[%s5 + $0x90] sm:$0xff]
    %v401 = vld [vmem:[%s5 + $0x98] sm:$0xf]
    %v402 = vld [vmem:[%s5 + $0x9c] sm:$0xff]
    %v403 = vld [vmem:[%s5 + $0xa4] sm:$0xf]
    %v404 = vld [vmem:[%s5 + $0xa8] sm:$0xff]
    %v405 = vld [vmem:[%s5 + $0xb0] sm:$0xf]
    %v406 = vld [vmem:[%s5 + $0xb4] sm:$0xff]
    %v407 = vld [vmem:[%s5 + $0xbc] sm:$0xf]
    %v408 = vld [vmem:[%s5 + $0xc0] sm:$0xff]
    %v409 = vld [vmem:[%s5 + $0xc8] sm:$0xf]
    %v410 = vld [vmem:[%s5 + $0xcc] sm:$0xff]
    %v411 = vld [vmem:[%s5 + $0xd4] sm:$0xf]
    %v412 = vld [vmem:[%s5 + $0xd8] sm:$0xff]
    %v413 = vld [vmem:[%s5 + $0xe0] sm:$0xf]
    %v414 = vld [vmem:[%s5 + $0xe4] sm:$0xff]
    %v415 = vld [vmem:[%s5 + $0xec] sm:$0xf]
    %v416 = vld [vmem:[%s5 + $0xf0] sm:$0xff]
    %v417 = vld [vmem:[%s5 + $0xf8] sm:$0xf]
    %v418 = vld [vmem:[%s5 + $0xfc] sm:$0xff]
    %v419 = vld [vmem:[%s5 + $0x104] sm:$0xf]
    %v420 = vld [vmem:[%s5 + $0x108] sm:$0xff]
    %v421 = vld [vmem:[%s5 + $0x110] sm:$0xf]
    %v422 = vld [vmem:[%s5 + $0x114] sm:$0xff]
    %v423 = vld [vmem:[%s5 + $0x11c] sm:$0xf]
    %v424 = vld [vmem:[%s5 + $0x120] sm:$0xff]
    %v425 = vld [vmem:[%s5 + $0x128] sm:$0xf]
    %v426 = vld [vmem:[%s5 + $0x12c] sm:$0xff]
    %v427 = vld [vmem:[%s5 + $0x134] sm:$0xf]
    %v428 = vld [vmem:[%s5 + $0x138] sm:$0xff]
    %v429 = vld [vmem:[%s5 + $0x140] sm:$0xf]
    %v430 = vld [vmem:[%s5 + $0x144] sm:$0xff]
    %v431 = vld [vmem:[%s5 + $0x14c] sm:$0xf]
    %v432 = vld [vmem:[%s5 + $0x150] sm:$0xff]
    %v433 = vld [vmem:[%s5 + $0x158] sm:$0xf]
    %v434 = vld [vmem:[%s5 + $0x15c] sm:$0xff]
    %v435 = vld [vmem:[%s5 + $0x164] sm:$0xf]
    %v436 = vld [vmem:[%s5 + $0x168] sm:$0xff]
    %v437 = vld [vmem:[%s5 + $0x170] sm:$0xf]
    %v438 = vld [vmem:[%s5 + $0x174] sm:$0xff]
    %v439 = vld [vmem:[%s5 + $0x17c] sm:$0xf]
    %v440 = vld [vmem:[%s6] sm:$0x7]
    %v442 = vlaneseq
    %v443 = vshrl.u32 %v442, 7
    %v444 = vsub.s32 0, %v443
    %v445 = vrot.slane %v440, %v444
    %v446 = vlaneseq
    %v447 = vshrl.u32 %v446, 7
    %v448 = vsub.s32 1, %v447
    %v449 = vrot.slane %v440, %v448
    %v450 = vlaneseq
    %v451 = vshrl.u32 %v450, 7
    %v452 = vsub.s32 2, %v451
    %v453 = vrot.slane %v440, %v452
    %v521 = vunpack.c.l.b16 %v376
    %v522 = vunpack.c.h.b16 %v376
    %v523 = vunpack.c.l.b16 %v377
    %v524 = vunpack.c.l.b16 %v378
    %v525 = vunpack.c.h.b16 %v378
    %v526 = vunpack.c.l.b16 %v379
    %v527 = vunpack.c.l.b16 %v380
    %v528 = vunpack.c.h.b16 %v380
    %v529 = vunpack.c.l.b16 %v381
    %v530 = vunpack.c.l.b16 %v382
    %v531 = vunpack.c.h.b16 %v382
    %v532 = vunpack.c.l.b16 %v383
    %v533 = vunpack.c.l.b16 %v384
    %v534 = vunpack.c.h.b16 %v384
    %v535 = vunpack.c.l.b16 %v385
    %v536 = vunpack.c.l.b16 %v386
    %v537 = vunpack.c.h.b16 %v386
    %v538 = vunpack.c.l.b16 %v387
    %v539 = vunpack.c.l.b16 %v388
    %v540 = vunpack.c.h.b16 %v388
    %v541 = vunpack.c.l.b16 %v389
    %v542 = vunpack.c.l.b16 %v390
    %v543 = vunpack.c.h.b16 %v390
    %v544 = vunpack.c.l.b16 %v391
    %v545 = vunpack.c.l.b16 %v392
    %v546 = vunpack.c.h.b16 %v392
    %v547 = vunpack.c.l.b16 %v393
    %v548 = vunpack.c.l.b16 %v394
    %v549 = vunpack.c.h.b16 %v394
    %v550 = vunpack.c.l.b16 %v395
    %v551 = vunpack.c.l.b16 %v396
    %v552 = vunpack.c.h.b16 %v396
    %v553 = vunpack.c.l.b16 %v397
    %v554 = vunpack.c.l.b16 %v398
    %v555 = vunpack.c.h.b16 %v398
    %v556 = vunpack.c.l.b16 %v399
    %v557 = vunpack.c.l.b16 %v400
    %v558 = vunpack.c.h.b16 %v400
    %v559 = vunpack.c.l.b16 %v401
    %v560 = vunpack.c.l.b16 %v402
    %v561 = vunpack.c.h.b16 %v402
    %v562 = vunpack.c.l.b16 %v403
    %v563 = vunpack.c.l.b16 %v404
    %v564 = vunpack.c.h.b16 %v404
    %v565 = vunpack.c.l.b16 %v405
    %v566 = vunpack.c.l.b16 %v406
    %v567 = vunpack.c.h.b16 %v406
    %v568 = vunpack.c.l.b16 %v407
    %v569 = vunpack.c.l.b16 %v408
    %v570 = vunpack.c.h.b16 %v408
    %v571 = vunpack.c.l.b16 %v409
    %v572 = vunpack.c.l.b16 %v410
    %v573 = vunpack.c.h.b16 %v410
    %v574 = vunpack.c.l.b16 %v411
    %v575 = vunpack.c.l.b16 %v412
    %v576 = vunpack.c.h.b16 %v412
    %v577 = vunpack.c.l.b16 %v413
    %v578 = vunpack.c.l.b16 %v414
    %v579 = vunpack.c.h.b16 %v414
    %v580 = vunpack.c.l.b16 %v415
    %v581 = vunpack.c.l.b16 %v416
    %v582 = vunpack.c.h.b16 %v416
    %v583 = vunpack.c.l.b16 %v417
    %v584 = vunpack.c.l.b16 %v418
    %v585 = vunpack.c.h.b16 %v418
    %v586 = vunpack.c.l.b16 %v419
    %v587 = vunpack.c.l.b16 %v420
    %v588 = vunpack.c.h.b16 %v420
    %v589 = vunpack.c.l.b16 %v421
    %v590 = vunpack.c.l.b16 %v422
    %v591 = vunpack.c.h.b16 %v422
    %v592 = vunpack.c.l.b16 %v423
    %v593 = vunpack.c.l.b16 %v424
    %v594 = vunpack.c.h.b16 %v424
    %v595 = vunpack.c.l.b16 %v425
    %v596 = vunpack.c.l.b16 %v426
    %v597 = vunpack.c.h.b16 %v426
    %v598 = vunpack.c.l.b16 %v427
    %v599 = vunpack.c.l.b16 %v428
    %v600 = vunpack.c.h.b16 %v428
    %v601 = vunpack.c.l.b16 %v429
    %v602 = vunpack.c.l.b16 %v430
    %v603 = vunpack.c.h.b16 %v430
    %v604 = vunpack.c.l.b16 %v431
    %v605 = vunpack.c.l.b16 %v432
    %v606 = vunpack.c.h.b16 %v432
    %v607 = vunpack.c.l.b16 %v433
    %v608 = vunpack.c.l.b16 %v434
    %v609 = vunpack.c.h.b16 %v434
    %v610 = vunpack.c.l.b16 %v435
    %v611 = vunpack.c.l.b16 %v436
    %v612 = vunpack.c.h.b16 %v436
    %v613 = vunpack.c.l.b16 %v437
    %v614 = vunpack.c.l.b16 %v438
    %v615 = vunpack.c.h.b16 %v438
    %v616 = vunpack.c.l.b16 %v439
    %v617 = vpack.c.b16 %v524, %v521
    %v618 = vpack.c.b16 %v525, %v522
    %v619 = vpack.c.b16 %v526, %v523
    %v620 = vpack.c.b16 %v530, %v527
    %v621 = vpack.c.b16 %v531, %v528
    %v622 = vpack.c.b16 %v532, %v529
    %v623 = vpack.c.b16 %v536, %v533
    %v624 = vpack.c.b16 %v537, %v534
    %v625 = vpack.c.b16 %v538, %v535
    %v626 = vpack.c.b16 %v542, %v539
    %v627 = vpack.c.b16 %v543, %v540
    %v628 = vpack.c.b16 %v544, %v541
    %v629 = vpack.c.b16 %v548, %v545
    %v630 = vpack.c.b16 %v549, %v546
    %v631 = vpack.c.b16 %v550, %v547
    %v632 = vpack.c.b16 %v554, %v551
    %v633 = vpack.c.b16 %v555, %v552
    %v634 = vpack.c.b16 %v556, %v553
    %v635 = vpack.c.b16 %v560, %v557
    %v636 = vpack.c.b16 %v561, %v558
    %v637 = vpack.c.b16 %v562, %v559
    %v638 = vpack.c.b16 %v566, %v563
    %v639 = vpack.c.b16 %v567, %v564
    %v640 = vpack.c.b16 %v568, %v565
    %v641 = vpack.c.b16 %v572, %v569
    %v642 = vpack.c.b16 %v573, %v570
    %v643 = vpack.c.b16 %v574, %v571
    %v644 = vpack.c.b16 %v578, %v575
    %v645 = vpack.c.b16 %v579, %v576
    %v646 = vpack.c.b16 %v580, %v577
    %v647 = vpack.c.b16 %v584, %v581
    %v648 = vpack.c.b16 %v585, %v582
    %v649 = vpack.c.b16 %v586, %v583
    %v650 = vpack.c.b16 %v590, %v587
    %v651 = vpack.c.b16 %v591, %v588
    %v652 = vpack.c.b16 %v592, %v589
    %v653 = vpack.c.b16 %v596, %v593
    %v654 = vpack.c.b16 %v597, %v594
    %v655 = vpack.c.b16 %v598, %v595
    %v656 = vpack.c.b16 %v602, %v599
    %v657 = vpack.c.b16 %v603, %v600
    %v658 = vpack.c.b16 %v604, %v601
    %v659 = vpack.c.b16 %v608, %v605
    %v660 = vpack.c.b16 %v609, %v606
    %v661 = vpack.c.b16 %v610, %v607
    %v662 = vpack.c.b16 %v614, %v611
    %v663 = vpack.c.b16 %v615, %v612
    %v664 = vpack.c.b16 %v616, %v613
    %713 = vmatprep.subr.bf16.mxu0 %v618
    %714 = vmatpush1.bf16.msra.mxu0 %v617
    %715 = vmatprep.subr.bf16.mxu0 %v621
    %716 = vmatpush1.bf16.msra.mxu0 %v620
    %717 = vmatprep.subr.bf16.mxu0 %v624
    %718 = vmatpush1.bf16.msra.mxu0 %v623
    %719 = vmatprep.subr.bf16.mxu0 %v627
    %720 = vmatpush1.bf16.msra.mxu0 %v626
    %721 = vmatprep.subr.bf16.mxu0 %v630
    %722 = vmatpush1.bf16.msra.mxu0 %v629
    %723 = vmatprep.subr.bf16.mxu0 %v633
    %724 = vmatpush1.bf16.msra.mxu0 %v632
    %725 = vmatprep.subr.bf16.mxu0 %v636
    %726 = vmatpush1.bf16.msra.mxu0 %v635
    %727 = vmatprep.subr.bf16.mxu0 %v639
    %728 = vmatpush1.bf16.msra.mxu0 %v638
    %729 = vmatprep.subr.bf16.mxu0 %v642
    %730 = vmatpush1.bf16.msra.mxu0 %v641
    %731 = vmatprep.subr.bf16.mxu0 %v645
    %732 = vmatpush1.bf16.msra.mxu0 %v644
    %733 = vmatprep.subr.bf16.mxu0 %v648
    %734 = vmatpush1.bf16.msra.mxu0 %v647
    %735 = vmatprep.subr.bf16.mxu0 %v651
    %736 = vmatpush1.bf16.msra.mxu0 %v650
    %737 = vmatprep.subr.bf16.mxu0 %v654
    %738 = vmatpush1.bf16.msra.mxu0 %v653
    %739 = vmatprep.subr.bf16.mxu0 %v657
    %740 = vmatpush1.bf16.msra.mxu0 %v656
    %741 = vmatprep.subr.bf16.mxu0 %v660
    %742 = vmatpush1.bf16.msra.mxu0 %v659
    %743 = vmatprep.subr.bf16.mxu0 %v663
    %744 = vmatpush1.bf16.msra.mxu0 %v662
    %745 = vmatprep.mubr.bf16.mxu0 %v375
    %746 = vmatmul.mubr.bf16.gmra.mrb[0].mxu0 %v374
    %v747 = vpop.f32.mrb[0].mxu0
    %v748 = vadd.f32 %v445, %v747
    %v749 = vpop.f32.mrb[0].mxu0
    %v750 = vadd.f32 %v449, %v749
    %v751 = vpop.f32.mrb[0].mxu0
    %v752 = vpop.f32.mrb[0].mxu0
    %753 = vdwg.mxu0
    %754 = vmatprep.subr.bf16.mxu0 0
    %755 = vmatpush1.bf16.msra.mxu0 %v619
    %756 = vmatprep.subr.bf16.mxu0 0
    %757 = vmatpush1.bf16.msra.mxu0 %v622
    %758 = vmatprep.subr.bf16.mxu0 0
    %759 = vmatpush1.bf16.msra.mxu0 %v625
    %760 = vmatprep.subr.bf16.mxu0 0
    %761 = vmatpush1.bf16.msra.mxu0 %v628
    %762 = vmatprep.subr.bf16.mxu0 0
    %763 = vmatpush1.bf16.msra.mxu0 %v631
    %764 = vmatprep.subr.bf16.mxu0 0
    %765 = vmatpush1.bf16.msra.mxu0 %v634
    %766 = vmatprep.subr.bf16.mxu0 0
    %767 = vmatpush1.bf16.msra.mxu0 %v637
    %768 = vmatprep.subr.bf16.mxu0 0
    %769 = vmatpush1.bf16.msra.mxu0 %v640
    %770 = vmatprep.subr.bf16.mxu0 0
    %771 = vmatpush1.bf16.msra.mxu0 %v643
    %772 = vmatprep.subr.bf16.mxu0 0
    %773 = vmatpush1.bf16.msra.mxu0 %v646
    %774 = vmatprep.subr.bf16.mxu0 0
    %775 = vmatpush1.bf16.msra.mxu0 %v649
    %776 = vmatprep.subr.bf16.mxu0 0
    %777 = vmatpush1.bf16.msra.mxu0 %v652
    %778 = vmatprep.subr.bf16.mxu0 0
    %779 = vmatpush1.bf16.msra.mxu0 %v655
    %780 = vmatprep.subr.bf16.mxu0 0
    %781 = vmatpush1.bf16.msra.mxu0 %v658
    %782 = vmatprep.subr.bf16.mxu0 0
    %783 = vmatpush1.bf16.msra.mxu0 %v661
    %784 = vmatprep.subr.bf16.mxu0 0
    %785 = vmatpush1.bf16.msra.mxu0 %v664
    %786 = vmatprep.mubr.bf16.mxu0 %v375
    %787 = vmatmul.mubr.bf16.gmra.mrb[0].mxu0 %v374
    %v788 = vpop.f32.mrb[0].mxu0
    %v789 = vadd.f32 %v453, %v788
    %v790 = vpop.f32.mrb[0].mxu0
    %v791 = vpop.f32.mrb[0].mxu0
    %v792 = vpop.f32.mrb[0].mxu0
    %793 = vdwg.mxu0
    %795 = vset.pattern.permute.xlu0 0
    %796 = vperm.xlu0 %795, %v789
    %v797 = vpop.permute.xlu0 %796
    %v799 = vsub.f32 %v748, %v797
    %v800 = vsub.f32 %v750, %v797
    %v801 = vmul.f32 %v799, %v799
    %v802 = vmul.f32 %v800, %v800
    %803 = vmatprep.subr.mxu0 0.0
    %804 = vmatpush1.msra.mxu0 %v233
    %805 = vmatprep.subr.mxu0 0.0
    %806 = vmatpush1.msra.mxu0 %v234
    %807 = vmatprep.subr.mxu0 0.0
    %808 = vmatpush1.msra.mxu0 %v235
    %809 = vmatprep.subr.mxu0 0.0
    %810 = vmatpush1.msra.mxu0 %v236
    %811 = vmatprep.subr.mxu0 0.0
    %812 = vmatpush1.msra.mxu0 %v237
    %813 = vmatprep.subr.mxu0 0.0
    %814 = vmatpush1.msra.mxu0 %v238
    %815 = vmatprep.subr.mxu0 0.0
    %816 = vmatpush1.msra.mxu0 %v239
    %817 = vmatprep.subr.mxu0 0.0
    %818 = vmatpush1.msra.mxu0 %v240
    %819 = vmatprep.subr.mxu0 0.0
    %820 = vmatpush1.msra.mxu0 %v241
    %821 = vmatprep.subr.mxu0 0.0
    %822 = vmatpush1.msra.mxu0 %v242
    %823 = vmatprep.subr.mxu0 0.0
    %824 = vmatpush1.msra.mxu0 %v243
    %825 = vmatprep.subr.mxu0 0.0
    %826 = vmatpush1.msra.mxu0 %v244
    %827 = vmatprep.subr.mxu0 0.0
    %828 = vmatpush1.msra.mxu0 %v245
    %829 = vmatprep.subr.mxu0 0.0
    %830 = vmatpush1.msra.mxu0 %v246
    %831 = vmatprep.subr.mxu0 0.0
    %832 = vmatpush1.msra.mxu0 %v247
    %833 = vmatprep.subr.mxu0 0.0
    %834 = vmatpush1.msra.mxu0 %v248
    %835 = vmatprep.subr.mxu0 0.0
    %836 = vmatpush1.msra.mxu0 %v249
    %837 = vmatprep.subr.mxu0 0.0
    %838 = vmatpush1.msra.mxu0 %v250
    %839 = vmatprep.subr.mxu0 0.0
    %840 = vmatpush1.msra.mxu0 %v251
    %841 = vmatprep.subr.mxu0 0.0
    %842 = vmatpush1.msra.mxu0 %v252
    %843 = vmatprep.subr.mxu0 0.0
    %844 = vmatpush1.msra.mxu0 %v253
    %845 = vmatprep.subr.mxu0 0.0
    %846 = vmatpush1.msra.mxu0 %v254
    %847 = vmatprep.subr.mxu0 0.0
    %848 = vmatpush1.msra.mxu0 %v255
    %849 = vmatprep.subr.mxu0 0.0
    %850 = vmatpush1.msra.mxu0 %v256
    %851 = vmatprep.subr.mxu0 0.0
    %852 = vmatpush1.msra.mxu0 %v257
    %853 = vmatprep.subr.mxu0 0.0
    %854 = vmatpush1.msra.mxu0 %v258
    %855 = vmatprep.subr.mxu0 0.0
    %856 = vmatpush1.msra.mxu0 %v259
    %857 = vmatprep.subr.mxu0 0.0
    %858 = vmatpush1.msra.mxu0 %v260
    %859 = vmatprep.subr.mxu0 0.0
    %860 = vmatpush1.msra.mxu0 %v261
    %861 = vmatprep.subr.mxu0 0.0
    %862 = vmatpush1.msra.mxu0 %v262
    %863 = vmatprep.subr.mxu0 0.0
    %864 = vmatpush1.msra.mxu0 %v263
    %865 = vmatprep.subr.mxu0 0.0
    %866 = vmatpush1.msra.mxu0 %v264
    %867 = vmatprep.mubr.f32.mxu0 %v802
    %868 = vmatmul.mubr.f32.gmra.mrb[0].mxu0 %v801
    %v869 = vpop.f32.mrb[0].mxu0
    %v870 = vadd.f32 0.0, %v869
    %v871 = vpop.f32.mrb[0].mxu0
    %872 = vdwg.mxu0
    %v873 = vadd.f32 %v870, 1e-05
    %v874 = vrsqrt.pop %v873
    %876 = vset.pattern.permute.xlu0 0
    %877 = vperm.xlu0 %876, %v874
    %v878 = vpop.permute.xlu0 %877
    %v880 = vmul.f32 %v799, %v878
    %v881 = vmul.f32 %v800, %v878
    %v882 = vld [vmem:[%s7] sm:$0x3]
    %v884 = vlaneseq
    %v885 = vshrl.u32 %v884, 7
    %v886 = vsub.s32 0, %v885
    %v887 = vrot.slane %v882, %v886
    %v888 = vlaneseq
    %v889 = vshrl.u32 %v888, 7
    %v890 = vsub.s32 1, %v889
    %v891 = vrot.slane %v882, %v890
    %v894 = vmul.f32 %v880, %v887
    %v895 = vmul.f32 %v881, %v891
    %v896 = vld [vmem:[%s8] sm:$0x3]
    %v898 = vlaneseq
    %v899 = vshrl.u32 %v898, 7
    %v900 = vsub.s32 0, %v899
    %v901 = vrot.slane %v896, %v900
    %v902 = vlaneseq
    %v903 = vshrl.u32 %v902, 7
    %v904 = vsub.s32 1, %v903
    %v905 = vrot.slane %v896, %v904
    %v908 = vadd.f32 %v894, %v901
    %v909 = vadd.f32 %v895, %v905
    %v910 = vmax.f32 %v908, 0.0
    %v911 = vmax.f32 %v909, 0.0
    %v912 = vpack.c.bf16 %v910, %v910
    %v913 = vpack.c.bf16 %v911, %v911
    %v914 = vld [vmem:[%s10] sm:$0xf]
    %v915 = vld [vmem:[%s10 + $0x4] sm:$0xf]
    %v916 = vld [vmem:[%s10 + $0x8] sm:$0xf]
    %v917 = vld [vmem:[%s10 + $0xc] sm:$0xf]
    %v918 = vld [vmem:[%s10 + $0x10] sm:$0xf]
    %v919 = vld [vmem:[%s10 + $0x14] sm:$0xf]
    %v920 = vld [vmem:[%s10 + $0x18] sm:$0xf]
    %v921 = vld [vmem:[%s10 + $0x1c] sm:$0xf]
    %v922 = vld [vmem:[%s10 + $0x20] sm:$0xf]
    %v923 = vld [vmem:[%s10 + $0x24] sm:$0xf]
    %v924 = vld [vmem:[%s10 + $0x28] sm:$0xf]
    %v925 = vld [vmem:[%s10 + $0x2c] sm:$0xf]
    %v926 = vld [vmem:[%s10 + $0x30] sm:$0xf]
    %v927 = vld [vmem:[%s10 + $0x34] sm:$0xf]
    %v928 = vld [vmem:[%s10 + $0x38] sm:$0xf]
    %v929 = vld [vmem:[%s10 + $0x3c] sm:$0xf]
    %v930 = vld [vmem:[%s10 + $0x40] sm:$0xf]
    %v931 = vld [vmem:[%s10 + $0x44] sm:$0xf]
    %v932 = vld [vmem:[%s10 + $0x48] sm:$0xf]
    %v933 = vld [vmem:[%s10 + $0x4c] sm:$0xf]
    %v934 = vld [vmem:[%s10 + $0x50] sm:$0xf]
    %v935 = vld [vmem:[%s10 + $0x54] sm:$0xf]
    %v936 = vld [vmem:[%s10 + $0x58] sm:$0xf]
    %v937 = vld [vmem:[%s10 + $0x5c] sm:$0xf]
    %v938 = vld [vmem:[%s10 + $0x60] sm:$0xf]
    %v939 = vld [vmem:[%s10 + $0x64] sm:$0xf]
    %v940 = vld [vmem:[%s10 + $0x68] sm:$0xf]
    %v941 = vld [vmem:[%s10 + $0x6c] sm:$0xf]
    %v942 = vld [vmem:[%s10 + $0x70] sm:$0xf]
    %v943 = vld [vmem:[%s10 + $0x74] sm:$0xf]
    %v944 = vld [vmem:[%s10 + $0x78] sm:$0xf]
    %v945 = vld [vmem:[%s10 + $0x7c] sm:$0xf]
    %v978 = vunpack.c.l.b16 %v914
    %v979 = vunpack.c.l.b16 %v915
    %v980 = vunpack.c.l.b16 %v916
    %v981 = vunpack.c.l.b16 %v917
    %v982 = vunpack.c.l.b16 %v918
    %v983 = vunpack.c.l.b16 %v919
    %v984 = vunpack.c.l.b16 %v920
    %v985 = vunpack.c.l.b16 %v921
    %v986 = vunpack.c.l.b16 %v922
    %v987 = vunpack.c.l.b16 %v923
    %v988 = vunpack.c.l.b16 %v924
    %v989 = vunpack.c.l.b16 %v925
    %v990 = vunpack.c.l.b16 %v926
    %v991 = vunpack.c.l.b16 %v927
    %v992 = vunpack.c.l.b16 %v928
    %v993 = vunpack.c.l.b16 %v929
    %v994 = vunpack.c.l.b16 %v930
    %v995 = vunpack.c.l.b16 %v931
    %v996 = vunpack.c.l.b16 %v932
    %v997 = vunpack.c.l.b16 %v933
    %v998 = vunpack.c.l.b16 %v934
    %v999 = vunpack.c.l.b16 %v935
    %v1000 = vunpack.c.l.b16 %v936
    %v1001 = vunpack.c.l.b16 %v937
    %v1002 = vunpack.c.l.b16 %v938
    %v1003 = vunpack.c.l.b16 %v939
    %v1004 = vunpack.c.l.b16 %v940
    %v1005 = vunpack.c.l.b16 %v941
    %v1006 = vunpack.c.l.b16 %v942
    %v1007 = vunpack.c.l.b16 %v943
    %v1008 = vunpack.c.l.b16 %v944
    %v1009 = vunpack.c.l.b16 %v945
    %v1010 = vpack.c.b16 %v979, %v978
    %v1011 = vpack.c.b16 %v981, %v980
    %v1012 = vpack.c.b16 %v983, %v982
    %v1013 = vpack.c.b16 %v985, %v984
    %v1014 = vpack.c.b16 %v987, %v986
    %v1015 = vpack.c.b16 %v989, %v988
    %v1016 = vpack.c.b16 %v991, %v990
    %v1017 = vpack.c.b16 %v993, %v992
    %v1018 = vpack.c.b16 %v995, %v994
    %v1019 = vpack.c.b16 %v997, %v996
    %v1020 = vpack.c.b16 %v999, %v998
    %v1021 = vpack.c.b16 %v1001, %v1000
    %v1022 = vpack.c.b16 %v1003, %v1002
    %v1023 = vpack.c.b16 %v1005, %v1004
    %v1024 = vpack.c.b16 %v1007, %v1006
    %v1025 = vpack.c.b16 %v1009, %v1008
    %1042 = vmatprep.subr.bf16.mxu0 0
    %1043 = vmatpush1.bf16.msra.mxu0 %v1010
    %1044 = vmatprep.subr.bf16.mxu0 0
    %1045 = vmatpush1.bf16.msra.mxu0 %v1011
    %1046 = vmatprep.subr.bf16.mxu0 0
    %1047 = vmatpush1.bf16.msra.mxu0 %v1012
    %1048 = vmatprep.subr.bf16.mxu0 0
    %1049 = vmatpush1.bf16.msra.mxu0 %v1013
    %1050 = vmatprep.subr.bf16.mxu0 0
    %1051 = vmatpush1.bf16.msra.mxu0 %v1014
    %1052 = vmatprep.subr.bf16.mxu0 0
    %1053 = vmatpush1.bf16.msra.mxu0 %v1015
    %1054 = vmatprep.subr.bf16.mxu0 0
    %1055 = vmatpush1.bf16.msra.mxu0 %v1016
    %1056 = vmatprep.subr.bf16.mxu0 0
    %1057 = vmatpush1.bf16.msra.mxu0 %v1017
    %1058 = vmatprep.subr.bf16.mxu0 0
    %1059 = vmatpush1.bf16.msra.mxu0 %v1018
    %1060 = vmatprep.subr.bf16.mxu0 0
    %1061 = vmatpush1.bf16.msra.mxu0 %v1019
    %1062 = vmatprep.subr.bf16.mxu0 0
    %1063 = vmatpush1.bf16.msra.mxu0 %v1020
    %1064 = vmatprep.subr.bf16.mxu0 0
    %1065 = vmatpush1.bf16.msra.mxu0 %v1021
    %1066 = vmatprep.subr.bf16.mxu0 0
    %1067 = vmatpush1.bf16.msra.mxu0 %v1022
    %1068 = vmatprep.subr.bf16.mxu0 0
    %1069 = vmatpush1.bf16.msra.mxu0 %v1023
    %1070 = vmatprep.subr.bf16.mxu0 0
    %1071 = vmatpush1.bf16.msra.mxu0 %v1024
    %1072 = vmatprep.subr.bf16.mxu0 0
    %1073 = vmatpush1.bf16.msra.mxu0 %v1025
    %1074 = vmatprep.mubr.bf16.mxu0 %v913
    %1075 = vmatmul.mubr.bf16.gmra.mrb[0].mxu0 %v912
    %v1076 = vpop.f32.mrb[0].mxu0
    %v1077 = vadd.f32 0.0, %v1076
    %v1078 = vpop.f32.mrb[0].mxu0
    %v1079 = vpop.f32.mrb[0].mxu0
    %v1080 = vpop.f32.mrb[0].mxu0
    %1081 = vdwg.mxu0
    %v1082 = vld [vmem:[#allocation2] sm:$0x1]
    %v1084 = vlaneseq
    %v1085 = vshrl.u32 %v1084, 7
    %v1086 = vsub.s32 0, %v1085
    %v1087 = vrot.slane %v1082, %v1086
    %v1089 = vadd.f32 %v1077, %v1087
    %1090 = vxpose.xlu0.b32.start [1/16] %v1089, 128
    %1091 = vxpose.xlu0.b32.cont [2/16] 0.0, 128
    %1092 = vxpose.xlu0.b32.cont [3/16] 0.0, 128
    %1093 = vxpose.xlu0.b32.cont [4/16] 0.0, 128
    %1094 = vxpose.xlu0.b32.cont [5/16] 0.0, 128
    %1095 = vxpose.xlu0.b32.cont [6/16] 0.0, 128
    %1096 = vxpose.xlu0.b32.cont [7/16] 0.0, 128
    %1097 = vxpose.xlu0.b32.cont [8/16] 0.0, 128
    %1098 = vxpose.xlu0.b32.cont [9/16] 0.0, 128
    %1099 = vxpose.xlu0.b32.cont [10/16] 0.0, 128
    %1100 = vxpose.xlu0.b32.cont [11/16] 0.0, 128
    %1101 = vxpose.xlu0.b32.cont [12/16] 0.0, 128
    %1102 = vxpose.xlu0.b32.cont [13/16] 0.0, 128
    %1103 = vxpose.xlu0.b32.cont [14/16] 0.0, 128
    %1104 = vxpose.xlu0.b32.cont [15/16] 0.0, 128
    %1105 = vxpose.xlu0.b32.end [16/16] 0.0, 128
    %v1106 = vpop.trf.xlu0
    %v1107 = vpop.trf.xlu0
    %v1108 = vpop.trf.xlu0
    %v1109 = vpop.trf.xlu0
    %v1110 = vpop.trf.xlu0
    %v1111 = vpop.trf.xlu0
    %v1112 = vpop.trf.xlu0
    %v1113 = vpop.trf.xlu0
    %v1114 = vpop.trf.xlu0
    %v1115 = vpop.trf.xlu0
    %v1116 = vpop.trf.xlu0
    %v1117 = vpop.trf.xlu0
    %v1118 = vpop.trf.xlu0
    %v1119 = vpop.trf.xlu0
    %v1120 = vpop.trf.xlu0
    %v1121 = vpop.trf.xlu0
    %vm1122 = vcmask 57344
    %1123 = vst.msk [vmem:[#allocation3] sm:$0x1] %vm1122, %v1106
    // Predicated region
    $region50: #{value_mlp.1} parent=1 // pred_check
      _
    $region51: #{value_mlp.1} parent=1 // pred_check_branch
      %1125 = sbr.rel (0) target = $region53
    $region52: #{value_mlp.1} parent=1 // pred_region
      %s1127 = ssub.s32 16, 16
      %1128 = vsyncadd [#allocation4], %s1127
      %s1130 = sshll.u32 [#allocation3], 4
      %s1131 = int_to_ptr.vmem [resolvable:$true] %s1130
      %1133 = dma.vmem_to_hbm [thread:$0]  %s1131, 16, %s12, [#allocation4]
    $region53: #{value_mlp.1} parent=1 // pred_fallthru
      _
    // Predicated region
    $region54: #{value_mlp.1} parent=1 // pred_check
      _
    $region55: #{value_mlp.1} parent=1 // pred_check_branch
      %1135 = sbr.rel (0) target = $region57
    $region56: #{value_mlp.1} parent=1 // pred_region
      %1136 = dma.done [#allocation4], 16
    $region57: #{value_mlp.1} parent=1 // pred_fallthru
      _
    %1137 = vsyncpa [#allocation4], 1

</llo_original>
